<compile_context>
chip_gen: v5e
topology: v5e:2x2
jax: 0.10.0
libtpu: 0.0.40
codegen_flags: <defaults>
</compile_context>

<pallas_src>
import jax
import jax.numpy as jnp
from jax.experimental import pallas as pl
from jax.experimental.pallas import tpu as pltpu


def _adaptive_bounds(in_size: int, out_size: int):
    """PyTorch AdaptiveAvgPool bin boundaries (static)."""
    bounds = []
    for p in range(out_size):
        s = (p * in_size) // out_size
        e = -((-(p + 1) * in_size) // out_size)  # ceil((p+1)*H/P)
        bounds.append((s, e))
    return tuple(bounds)


def _part_pool_kernel(x_ref, pool_ref, scale_ref, o_ref):
    # x_ref:     (br, H*W)   input rows, spatial on lanes.
    # pool_ref:  (H*W, P)    static 0/1 membership matrix (input dtype).
    # scale_ref: (1, P)      f32 per-part 1/((e-s)*W).
    # o_ref:     (br, P)     pooled output rows.
    acc = jnp.dot(x_ref[...], pool_ref[...],
                  preferred_element_type=jnp.float32)          # (br, P) f32
    o_ref[...] = (acc * scale_ref[...]).astype(o_ref.dtype)


def _vmem_budget():
    """(block target bytes, scoped vmem limit) chosen per TPU generation."""
    try:
        info = pltpu.get_tpu_info()
        vmem_cap = int(getattr(info, "vmem_capacity_bytes", 64 << 20))
    except Exception:
        vmem_cap = 64 << 20
    if vmem_cap >= (100 << 20):        # v5e / v6e: 128 MiB VMEM per core
        return 16 << 20, 64 << 20
    return 12 << 20, 40 << 20          # v7x: 64 MiB VMEM per TensorCore


def _choose_block_rows(total_rows: int, row_bytes: int, target_bytes: int):
    """Row-block size: near the VMEM target, multiple of 8 (sublanes),
    with an even number of grid steps when possible (v7x 2-TC balance)."""
    br = max(1, min(total_rows, target_bytes // max(row_bytes, 1)))
    steps = pl.cdiv(total_rows, br)
    if total_rows > 1 and steps == 1:
        steps = 2                      # give both TensorCores some work
    elif steps > 1 and steps % 2 == 1:
        steps += 1                     # even step count balances 2 TCs
    br = pl.cdiv(total_rows, steps)
    if br < total_rows:
        br = max(8, pl.cdiv(br, 8) * 8)  # keep sublane dim a multiple of 8
    if br >= total_rows:
        br = total_rows                # full dim always satisfies the rule
    return br


def _build_pool_matrix(H: int, W: int, bounds, dtype):
    # (H*W, P) 0/1 matrix: column p selects rows h in [s_p, e_p), all W cols.
    h = jnp.arange(H)
    cols = [((h >= s) & (h < e)) for (s, e) in bounds]
    m_h = jnp.stack(cols, axis=1).astype(dtype)            # (H, P)
    return jnp.repeat(m_h, W, axis=0)                      # (H*W, P)


def _part_pool_single(x: jax.Array, num_parts: int) -> jax.Array:
    N, C, H, W = x.shape
    P = num_parts
    HW = H * W
    rows = N * C
    bounds = _adaptive_bounds(H, P)

    # Free reshape: trailing contiguous dims merge, no HBM traffic.
    x2d = x.reshape(rows, HW)

    pool = _build_pool_matrix(H, W, bounds, x.dtype)       # (HW, P) 0/1
    # TODO(synk): for integer inputs the mean would truncate on the final
    # cast; PartPooling is only used on float feature maps, so not handled.
    scale = jnp.asarray([1.0 / ((e - s) * W) for (s, e) in bounds],
                        dtype=jnp.float32).reshape(1, P)   # (1, P)

    target_bytes, vmem_limit = _vmem_budget()
    br = _choose_block_rows(rows, HW * x.dtype.itemsize, target_bytes)
    grid = (pl.cdiv(rows, br),)

    out2d = pl.pallas_call(
        _part_pool_kernel,
        out_shape=jax.ShapeDtypeStruct((rows, P), x.dtype),
        grid_spec=pltpu.PrefetchScalarGridSpec(
            num_scalar_prefetch=0,
            grid=grid,
            in_specs=[
                pl.BlockSpec((br, HW), lambda i: (i, 0)),
                pl.BlockSpec((HW, P), lambda i: (0, 0)),
                pl.BlockSpec((1, P), lambda i: (0, 0)),
            ],
            out_specs=pl.BlockSpec((br, P), lambda i: (i, 0)),
        ),
        compiler_params=pltpu.CompilerParams(
            dimension_semantics=("parallel",),
            vmem_limit_bytes=vmem_limit),
    )(x2d, pool, scale)

    # Free reshape back: (N*C, P) -> (N, C, P), matching the PyTorch view.
    return out2d.reshape(N, C, P)


def part_pooling(inputs, num_parts: int = 6):
    """Mirrors PartPooling.forward: handles a tuple of tensors or one tensor."""
    assert num_parts > 0
    if isinstance(inputs, tuple):
        return tuple(_part_pool_single(x, num_parts) for x in inputs)
    elif isinstance(inputs, jax.Array):
        return _part_pool_single(inputs, num_parts)
    else:
        raise TypeError("neck input should be tuple or jax.Array")


def _reference(x: jax.Array, num_parts: int) -> jax.Array:
    # Pure-JAX reference of AdaptiveAvgPool2d((P, 1)) + view
    outs = []
    for (s, e) in _adaptive_bounds(x.shape[2], num_parts):
        outs.append(jnp.mean(x[:, :, s:e, :], axis=(2, 3)))
    return jnp.stack(outs, axis=-1)


if __name__ == "__main__":
    key = jax.random.PRNGKey(0)
    # PartPooling has no learnable parameters (pure pooling neck).
    N, C, H, W = 2, 4, 16, 16
    num_parts = 6

    k1, k2 = jax.random.split(key)
    x = jax.random.normal(k1, (N, C, H, W), dtype=jnp.float32)
    x2 = jax.random.normal(k2, (N, C, H, W), dtype=jnp.float32)

    # single-tensor path
    out = part_pooling(x, num_parts)
    out = jax.block_until_ready(out)
    ref = _reference(x, num_parts)
    assert out.shape == (N, C, num_parts)
    assert jnp.allclose(out, ref, atol=1e-5, rtol=1e-5)

    # tuple path
    outs = part_pooling((x, x2), num_parts)
    outs = jax.block_until_ready(outs)
    refs = (_reference(x, num_parts), _reference(x2, num_parts))
    for o, r in zip(outs, refs):
        assert o.shape == (N, C, num_parts)
        assert jnp.allclose(o, r, atol=1e-5, rtol=1e-5)

    print("KERNEL_OK")
</pallas_src>

<mosaic_0001>
module attributes {stable_mosaic.version = 11 : i64} {
  func.func @_part_pool_kernel(%arg0: i32, %arg1: memref<8x256xf32, #tpu.memory_space<vmem>>, %arg2: memref<256x6xf32, #tpu.memory_space<vmem>>, %arg3: memref<1x6xf32, #tpu.memory_space<vmem>>, %arg4: memref<8x6xf32, #tpu.memory_space<vmem>>) attributes {dimension_semantics = [#tpu.dimension_semantics<parallel>], iteration_bounds = array<i64: 1>, scalar_prefetch = 0 : i64, scratch_operands = 0 : i64, tpu.core_type = #tpu.core_type<tc>, window_params = [{transform_indices = @transform_0, window_bounds = array<i64: 8, 256>}, {pipeline_mode = #tpu.pipeline_mode<synchronous>, transform_indices = @transform_1, window_bounds = array<i64: 256, 6>}, {pipeline_mode = #tpu.pipeline_mode<synchronous>, transform_indices = @transform_2, window_bounds = array<i64: 1, 6>}, {transform_indices = @transform_3, window_bounds = array<i64: 8, 6>}]} {
    %c0 = arith.constant 0 : index
    %c0_0 = arith.constant 0 : index
    %0 = vector.load %arg1[%c0, %c0_0] : memref<8x256xf32, #tpu.memory_space<vmem>>, vector<8x256xf32>
    %c0_1 = arith.constant 0 : index
    %c0_2 = arith.constant 0 : index
    %1 = vector.load %arg2[%c0_1, %c0_2] : memref<256x6xf32, #tpu.memory_space<vmem>>, vector<256x6xf32>
    %cst = arith.constant dense<0.000000e+00> : vector<8x6xf32>
    %2 = tpu.matmul %0, %1, %cst {dimension_numbers = #tpu.dot_dimension_numbers<[1], [0], [0], [1], [0, 0, 1, 1], [], []>} : vector<8x256xf32>, vector<256x6xf32>, vector<8x6xf32> -> vector<8x6xf32>
    %c0_3 = arith.constant 0 : index
    %c0_4 = arith.constant 0 : index
    %3 = vector.load %arg3[%c0_3, %c0_4] : memref<1x6xf32, #tpu.memory_space<vmem>>, vector<1x6xf32>
    %4 = vector.broadcast %3 : vector<1x6xf32> to vector<8x6xf32>
    %5 = arith.mulf %2, %4 : vector<8x6xf32>
    %c0_5 = arith.constant 0 : index
    %c0_6 = arith.constant 0 : index
    %6 = vector.load %arg4[%c0_5, %c0_6] : memref<8x6xf32, #tpu.memory_space<vmem>>, vector<8x6xf32>
    tpu.vector_store %arg4[%c0_5, %c0_6], %5 {strides = array<i32>} : memref<8x6xf32, #tpu.memory_space<vmem>>, vector<8x6xf32>,
    return
  }
  func.func @transform_0(%arg0: i32) -> (i32, i32) {
    %c0_i32 = arith.constant 0 : i32
    %c0_i32_0 = arith.constant 0 : i32
    return %arg0, %c0_i32 : i32, i32
  }
  func.func @transform_1(%arg0: i32) -> (i32, i32) {
    %c0_i32 = arith.constant 0 : i32
    %c0_i32_0 = arith.constant 0 : i32
    %c0_i32_1 = arith.constant 0 : i32
    return %c0_i32, %c0_i32_0 : i32, i32
  }
  func.func @transform_2(%arg0: i32) -> (i32, i32) {
    %c0_i32 = arith.constant 0 : i32
    %c0_i32_0 = arith.constant 0 : i32
    %c0_i32_1 = arith.constant 0 : i32
    return %c0_i32, %c0_i32_0 : i32, i32
  }
  func.func @transform_3(%arg0: i32) -> (i32, i32) {
    %c0_i32 = arith.constant 0 : i32
    %c0_i32_0 = arith.constant 0 : i32
    return %arg0, %c0_i32 : i32, i32
  }
}

</mosaic_0001>

<llo_original>
// kernel: tpu_custom_call.1
$region0: #{tpu_custom_call.1}
  #allocation0 [shape = 'u32[]', space=smem, size = 0x4, offset = 0x4, fixed_abs, tag = 'smem constant byte address 0x4 - core index']
  #allocation1 [shape = 'u32[72,128]{1,0:T(1,128)}', space=vmem, size = 0x9000, scoped, tag = 'internal scratch']
  %s0 = inlined_call_operand.vmem [shape: f32[8,256], index: 0, kind: input, shape index: {}]
  %s1 = inlined_call_operand.vmem [shape: f32[256,6], index: 1, kind: input, shape index: {}]
  %s2 = inlined_call_operand.vmem [shape: f32[1,6], index: 2, kind: input, shape index: {}]
  %s3 = inlined_call_operand.hbm [shape: f32[8,6], index: 3, kind: output, shape index: {}]
  %s4 = sld [smem:[#allocation0]]
  $region22: #{tpu_custom_call.1} parent=0
    _
  %s6 = ssub.s32 1, %s4
  %s7 = scalar_select 0, %s6, %s4
  $region1: #{tpu_custom_call.1} parent=0
    #allocation2 [shape = 'u8[4096]{0}', space=vmem, size = 0x1000, scoped, tag = 'output window, operand 0, single buffered']
    #allocation3 [shape = 's32[1]{0}', space=sflag, size = 0x4, scoped, tag = 'scoped memory for tpu_custom_call.1']
    %8 = vsyncpa [#allocation3], 0
    // Predicated region
    $region2: #{tpu_custom_call.1} parent=1 // pred_check
      _
    $region3: #{tpu_custom_call.1} parent=1 // pred_check_branch
      %10 = sbr.rel (0) target = $region5
    $region4: #{tpu_custom_call.1} parent=1 // pred_region
      _
    $region5: #{tpu_custom_call.1} parent=1 // pred_fallthru
      _
    // Predicated region
    $region6: #{tpu_custom_call.1} parent=1 // pred_check
      _
    $region7: #{tpu_custom_call.1} parent=1 // pred_check_branch
      %12 = sbr.rel (0) target = $region9
    $region8: #{tpu_custom_call.1} parent=1 // pred_region
      _
    $region9: #{tpu_custom_call.1} parent=1 // pred_fallthru
      _
    // Predicated region
    $region10: #{tpu_custom_call.1} parent=1 // pred_check
      _
    $region11: #{tpu_custom_call.1} parent=1 // pred_check_branch
      %14 = sbr.rel (0) target = $region13
    $region12: #{tpu_custom_call.1} parent=1 // pred_region
      _
    $region13: #{tpu_custom_call.1} parent=1 // pred_fallthru
      _
    %v15 = vld [vmem:[%s0] sm:$0xff]
    %v16 = vld [vmem:[%s0 + $0x8] sm:$0xff]
    %v17 = vld [vmem:[%s1] sm:$0xff]
    %v18 = vld [vmem:[%s1 + $0x8] sm:$0xff]
    %v19 = vld [vmem:[%s1 + $0x10] sm:$0xff]
    %v20 = vld [vmem:[%s1 + $0x18] sm:$0xff]
    %v21 = vld [vmem:[%s1 + $0x20] sm:$0xff]
    %v22 = vld [vmem:[%s1 + $0x28] sm:$0xff]
    %v23 = vld [vmem:[%s1 + $0x30] sm:$0xff]
    %v24 = vld [vmem:[%s1 + $0x38] sm:$0xff]
    %v25 = vld [vmem:[%s1 + $0x40] sm:$0xff]
    %v26 = vld [vmem:[%s1 + $0x48] sm:$0xff]
    %v27 = vld [vmem:[%s1 + $0x50] sm:$0xff]
    %v28 = vld [vmem:[%s1 + $0x58] sm:$0xff]
    %v29 = vld [vmem:[%s1 + $0x60] sm:$0xff]
    %v30 = vld [vmem:[%s1 + $0x68] sm:$0xff]
    %v31 = vld [vmem:[%s1 + $0x70] sm:$0xff]
    %v32 = vld [vmem:[%s1 + $0x78] sm:$0xff]
    %v33 = vld [vmem:[%s1 + $0x80] sm:$0xff]
    %v34 = vld [vmem:[%s1 + $0x88] sm:$0xff]
    %v35 = vld [vmem:[%s1 + $0x90] sm:$0xff]
    %v36 = vld [vmem:[%s1 + $0x98] sm:$0xff]
    %v37 = vld [vmem:[%s1 + $0xa0] sm:$0xff]
    %v38 = vld [vmem:[%s1 + $0xa8] sm:$0xff]
    %v39 = vld [vmem:[%s1 + $0xb0] sm:$0xff]
    %v40 = vld [vmem:[%s1 + $0xb8] sm:$0xff]
    %v41 = vld [vmem:[%s1 + $0xc0] sm:$0xff]
    %v42 = vld [vmem:[%s1 + $0xc8] sm:$0xff]
    %v43 = vld [vmem:[%s1 + $0xd0] sm:$0xff]
    %v44 = vld [vmem:[%s1 + $0xd8] sm:$0xff]
    %v45 = vld [vmem:[%s1 + $0xe0] sm:$0xff]
    %v46 = vld [vmem:[%s1 + $0xe8] sm:$0xff]
    %v47 = vld [vmem:[%s1 + $0xf0] sm:$0xff]
    %v48 = vld [vmem:[%s1 + $0xf8] sm:$0xff]
    %49 = vmatpush.msra.mxu0 %v32
    %50 = vmatpush.msra.mxu0 %v31
    %51 = vmatpush.msra.mxu0 %v30
    %52 = vmatpush.msra.mxu0 %v29
    %53 = vmatpush.msra.mxu0 %v28
    %54 = vmatpush.msra.mxu0 %v27
    %55 = vmatpush.msra.mxu0 %v26
    %56 = vmatpush.msra.mxu0 %v25
    %57 = vmatpush.msra.mxu0 %v24
    %58 = vmatpush.msra.mxu0 %v23
    %59 = vmatpush.msra.mxu0 %v22
    %60 = vmatpush.msra.mxu0 %v21
    %61 = vmatpush.msra.mxu0 %v20
    %62 = vmatpush.msra.mxu0 %v19
    %63 = vmatpush.msra.mxu0 %v18
    %64 = vmatpush.msra.mxu0 %v17
    %65 = vmatmul.f32.gmra.mxu0 %v15
    %v66 = vpop.f32.mrf.mxu0
    %v67 = vadd.f32 0.0, %v66
    %68 = vdwg.mxu0
    %69 = vmatpush.msra.mxu0 %v48
    %70 = vmatpush.msra.mxu0 %v47
    %71 = vmatpush.msra.mxu0 %v46
    %72 = vmatpush.msra.mxu0 %v45
    %73 = vmatpush.msra.mxu0 %v44
    %74 = vmatpush.msra.mxu0 %v43
    %75 = vmatpush.msra.mxu0 %v42
    %76 = vmatpush.msra.mxu0 %v41
    %77 = vmatpush.msra.mxu0 %v40
    %78 = vmatpush.msra.mxu0 %v39
    %79 = vmatpush.msra.mxu0 %v38
    %80 = vmatpush.msra.mxu0 %v37
    %81 = vmatpush.msra.mxu0 %v36
    %82 = vmatpush.msra.mxu0 %v35
    %83 = vmatpush.msra.mxu0 %v34
    %84 = vmatpush.msra.mxu0 %v33
    %85 = vmatmul.f32.gmra.mxu0 %v16
    %v86 = vpop.f32.mrf.mxu0
    %v87 = vadd.f32 %v67, %v86
    %88 = vdwg.mxu0
    %v89 = vld [vmem:[%s2] sm:$0x1]
    %v91 = vperm.slane %v89, 0
    %v93 = vmul.f32 %v87, %v91
    %vm94 = vcmask 48128
    %95 = vst.msk [vmem:[#allocation2] sm:$0xff] %vm94, %v93
    // Predicated region
    $region14: #{tpu_custom_call.1} parent=1 // pred_check
      _
    $region15: #{tpu_custom_call.1} parent=1 // pred_check_branch
      %97 = sbr.rel (0) target = $region17
    $region16: #{tpu_custom_call.1} parent=1 // pred_region
      %99 = vsyncadd [#allocation3], 0
      %s101 = sshll.u32 [#allocation2], 4
      %s102 = int_to_ptr.vmem [resolvable:$true] %s101
      %s103 = sshll.u32 %s3, 4
      %s104 = int_to_ptr.hbm [resolvable:$true] %s103
      %106 = dma.vmem_to_hbm [thread:$0]  %s102, 128, %s104, [#allocation3]
    $region17: #{tpu_custom_call.1} parent=1 // pred_fallthru
      _
    // Predicated region
    $region18: #{tpu_custom_call.1} parent=1 // pred_check
      _
    $region19: #{tpu_custom_call.1} parent=1 // pred_check_branch
      %108 = sbr.rel (0) target = $region21
    $region20: #{tpu_custom_call.1} parent=1 // pred_region
      %110 = dma.done [#allocation3], 128
    $region21: #{tpu_custom_call.1} parent=1 // pred_fallthru
      _
    %111 = vsyncpa [#allocation3], 1

</llo_original>
